<compile_context>
chip_gen: v6e
topology: v6e:2x2x1
jax: 0.10.0
libtpu: 0.0.40
codegen_flags: <defaults>
</compile_context>

<pallas_src>
import functools

import jax
import jax.numpy as jnp
from jax.experimental import pallas as pl
from jax.experimental.pallas import tpu as pltpu

_LANE = 128


def _round_up(x, m):
    return (x + m - 1) // m * m


def _temporal_block_kernel(x_ref, w1_ref, b1_ref, w2_ref, b2_ref, *rest,
                           K, dilation, pad, T, has_downsample):
    # x_ref : (TB, pad+T, Cip)    bf16 causally left-padded input (channels-last)
    # w1_ref: (K*Cip, Cop) bf16   weight-normed conv1, taps stacked on contraction
    # b1_ref: (1, Cop)     f32
    # w2_ref: (K*Cop, Cop) bf16   weight-normed conv2
    # b2_ref: (1, Cop)     f32
    # [wd_ref: (Cip, Cop) bf16, bd_ref: (1, Cop) f32]   only if has_downsample
    # o_ref : (TB, T, Cop)
    # h1_ref: (TB, pad+T, Cop) bf16 scratch: causally padded conv1 activation
    if has_downsample:
        wd_ref, bd_ref, o_ref, h1_ref = rest
    else:
        wd_ref = bd_ref = None
        o_ref, h1_ref = rest

    TB = x_ref.shape[0]
    Cip = x_ref.shape[2]
    Cop = o_ref.shape[2]

    def dilated_taps(ref, C):
        # Fold the K dilated taps into a lane-axis concat -> one MXU matmul
        # with contraction depth K*C (each piece is a 128-lane multiple, so the
        # concat is just vregs side by side).
        taps = [ref[:, pl.ds(k * dilation, T), :] for k in range(K)]
        cat = taps[0] if K == 1 else jnp.concatenate(taps, axis=-1)
        return cat.reshape(TB * T, K * C)

    # ---- conv1: dilated causal conv as one bf16 matmul, f32 accumulation ----
    h1 = jnp.dot(dilated_taps(x_ref, Cip), w1_ref[...],
                 preferred_element_type=jnp.float32)
    h1 = jnp.maximum(h1 + b1_ref[...], 0.0)
    # dropout1: identity (inference)

    # Stash the causally padded conv1 activation in bf16 scratch (it is only
    # consumed again as an MXU operand). The pad rows are zero-filled every
    # step: scratch is uninitialized and, under a parallel grid split across
    # TensorCores, per-core — gating on program_id==0 would be unsafe.
    if pad > 0:
        h1_ref[:, pl.ds(0, pad), :] = jnp.zeros((TB, pad, Cop), h1_ref.dtype)
    h1_ref[:, pl.ds(pad, T), :] = h1.reshape(TB, T, Cop).astype(h1_ref.dtype)

    # ---- conv2: dilated causal conv over h1 ----
    out = jnp.dot(dilated_taps(h1_ref, Cop), w2_ref[...],
                  preferred_element_type=jnp.float32)
    out = jnp.maximum(out + b2_ref[...], 0.0)
    # dropout2: identity (inference)

    # ---- residual path + final ReLU ----
    x_valid = x_ref[:, pl.ds(pad, T), :]                  # (TB, T, Cip)
    if has_downsample:
        res = jnp.dot(x_valid.reshape(TB * T, Cip), wd_ref[...],
                      preferred_element_type=jnp.float32) + bd_ref[...]
    else:
        # C_in == C_out (and Cip == Cop): identity residual (bf16 input slab).
        res = x_valid.reshape(TB * T, Cop).astype(jnp.float32)

    o_ref[...] = (jnp.maximum(out + res, 0.0)
                  .reshape(TB, T, Cop).astype(o_ref.dtype))


def temporal_block(x, conv1_v, conv1_g, conv1_b, conv2_v, conv2_g, conv2_b,
                   downsample_w=None, downsample_b=None, *,
                   kernel_size, dilation, padding, block_b=None,
                   channels_last=False):
    """TemporalBlock forward.

    x: (B, C_in, T) PyTorch layout (or (B, T, C_in) if channels_last=True).
    Returns (B, C_out, T) (or (B, T, C_out) if channels_last=True).
    """
    if channels_last:
        B, T, C_in = x.shape
    else:
        B, C_in, T = x.shape
    C_out = conv1_v.shape[0]
    K = kernel_size
    pad = padding
    # pyhealth's TCN always uses padding == (K-1)*dilation; the causal tap
    # indexing below (Chomp1d semantics) requires exactly that.
    assert pad == (K - 1) * dilation, "TemporalBlock requires padding == (K-1)*dilation"
    assert T % 8 == 0, "demo keeps T sublane-aligned"

    Cip = _round_up(C_in, _LANE)       # lane-padded channel counts
    Cop = _round_up(C_out, _LANE)
    Lp = T + pad

    # weight_norm (PyTorch default dim=0): w = g * v / ||v||, in f32, once.
    def _wn(v, g):
        v = v.astype(jnp.float32)
        nrm = jnp.sqrt(jnp.sum(v * v, axis=(1, 2), keepdims=True))
        return g.astype(jnp.float32).reshape(-1, 1, 1) * v / nrm

    # (C_out, C_in, K) -> (K*C_in_padded, C_out_padded) bf16 per-conv matrices.
    def _prep_conv(v, g, b, cin, cin_p):
        w = jnp.transpose(_wn(v, g), (2, 1, 0))                       # (K, cin, C_out)
        w = jnp.pad(w, ((0, 0), (0, cin_p - cin), (0, Cop - C_out)))
        w = w.reshape(K * cin_p, Cop).astype(jnp.bfloat16)
        bb = jnp.pad(b.astype(jnp.float32), (0, Cop - C_out)).reshape(1, Cop)
        return w, bb

    w1, b1 = _prep_conv(conv1_v, conv1_g, conv1_b, C_in, Cip)
    w2, b2 = _prep_conv(conv2_v, conv2_g, conv2_b, C_out, Cop)

    has_downsample = downsample_w is not None
    if has_downsample:
        wd = jnp.transpose(downsample_w[:, :, 0].astype(jnp.float32), (1, 0))
        wd = jnp.pad(wd, ((0, Cip - C_in), (0, Cop - C_out))).astype(jnp.bfloat16)
        bd = jnp.pad(downsample_b.astype(jnp.float32),
                     (0, Cop - C_out)).reshape(1, Cop)
    else:
        assert C_in == C_out

    # Channels-last bf16 slab, causally left-padded + lane-padded once in HBM.
    # (Stacked TemporalBlocks should pass channels_last=True to skip the
    #  boundary transposes and keep activations (B, T, C) end-to-end.)
    xt = x if channels_last else jnp.transpose(x, (0, 2, 1))
    xp = jnp.pad(xt.astype(jnp.bfloat16),
                 ((0, 0), (pad, 0), (0, Cip - C_in)))                 # (B, Lp, Cip)

    # ---- explicit VMEM budget + batch-block selection ----
    try:
        phys_vmem = int(pltpu.get_tpu_info().vmem_capacity_bytes)
    except Exception:
        phys_vmem = 64 * 1024 * 1024                                  # v7x floor
    budget = int(phys_vmem * 0.75)

    w_bytes = 2 * 2 * (w1.size + w2.size + (wd.size if has_downsample else 0))
    b_bytes = 2 * 3 * Cop * 4

    def _footprint(tb):
        x_blk = tb * Lp * Cip * 2                     # bf16 input block
        o_blk = tb * T * Cop * x.dtype.itemsize       # output block
        h1_scr = tb * Lp * Cop * 2                    # bf16 scratch
        taps = 2 * tb * T * K * max(Cip, Cop) * 2     # in-kernel concat temps
        return 2 * x_blk + 2 * o_blk + h1_scr + taps + w_bytes + b_bytes

    if block_b is None:
        divisors = [d for d in range(B, 0, -1) if B % d == 0]
        # prefer >= 2 grid steps so both v7x TensorCores get work
        pref = [d for d in divisors if B // d >= 2] or divisors
        tb = next((d for d in pref if _footprint(d) <= budget), pref[-1])
    else:
        tb = block_b
    assert B % tb == 0
    grid = (B // tb,)

    kernel = functools.partial(_temporal_block_kernel, K=K, dilation=dilation,
                               pad=pad, T=T, has_downsample=has_downsample)

    in_specs = [
        pl.BlockSpec((tb, Lp, Cip), lambda b: (b, 0, 0)),       # x (padded)
        pl.BlockSpec((K * Cip, Cop), lambda b: (0, 0)),         # conv1 weight
        pl.BlockSpec((1, Cop), lambda b: (0, 0)),               # conv1 bias
        pl.BlockSpec((K * Cop, Cop), lambda b: (0, 0)),         # conv2 weight
        pl.BlockSpec((1, Cop), lambda b: (0, 0)),               # conv2 bias
    ]
    args = [xp, w1, b1, w2, b2]
    if has_downsample:
        in_specs += [pl.BlockSpec((Cip, Cop), lambda b: (0, 0)),   # downsample w
                     pl.BlockSpec((1, Cop), lambda b: (0, 0))]     # downsample b
        args += [wd, bd]

    out = pl.pallas_call(
        kernel,
        out_shape=jax.ShapeDtypeStruct((B, T, Cop), x.dtype),
        grid_spec=pltpu.PrefetchScalarGridSpec(
            num_scalar_prefetch=0,
            grid=grid,
            in_specs=in_specs,
            out_specs=pl.BlockSpec((tb, T, Cop), lambda b: (b, 0, 0)),
            scratch_shapes=[pltpu.VMEM((tb, Lp, Cop), jnp.bfloat16)],
        ),
        compiler_params=pltpu.CompilerParams(
            dimension_semantics=("parallel",),
            vmem_limit_bytes=budget),
    )(*args)

    out = out[:, :, :C_out]                               # drop lane padding
    return out if channels_last else jnp.transpose(out, (0, 2, 1))


# ---------------------------------------------------------------------------
# Reference + demo
# ---------------------------------------------------------------------------

def _xavier_uniform(key, shape, dtype=jnp.float32):
    # Conv1d weight (C_out, C_in, K): fan_in = C_in*K, fan_out = C_out*K
    receptive = 1
    for s in shape[2:]:
        receptive *= s
    fan_in = shape[1] * receptive
    fan_out = shape[0] * receptive
    limit = float((6.0 / (fan_in + fan_out)) ** 0.5)
    return jax.random.uniform(key, shape, dtype, minval=-limit, maxval=limit)


def _reference(x, conv1_v, conv1_g, conv1_b, conv2_v, conv2_g, conv2_b,
               down_w, down_b, K, dilation, padding):
    def wn(v, g):
        nrm = jnp.sqrt(jnp.sum(v ** 2, axis=(1, 2), keepdims=True))
        return g.reshape(-1, 1, 1) * v / nrm

    def causal_conv(h, w, b):
        y = jax.lax.conv_general_dilated(
            h, w, window_strides=(1,), padding=[(padding, padding)],
            rhs_dilation=(dilation,), dimension_numbers=('NCH', 'OIH', 'NCH'))
        y = y[:, :, :y.shape[2] - padding]            # Chomp1d
        return y + b.reshape(1, -1, 1)

    h = jax.nn.relu(causal_conv(x, wn(conv1_v, conv1_g), conv1_b))
    h = jax.nn.relu(causal_conv(h, wn(conv2_v, conv2_g), conv2_b))
    res = jnp.einsum('oc,bct->bot', down_w[:, :, 0], x) + down_b.reshape(1, -1, 1)
    return jax.nn.relu(h + res)


if __name__ == "__main__":
    B, C_in, C_out, T = 2, 16, 32, 24         # batch, n_inputs, n_outputs, seq_len
    K, dilation = 3, 2
    padding = (K - 1) * dilation              # causal padding used by the TCN

    key = jax.random.PRNGKey(0)
    ks = jax.random.split(key, 9)

    x = jax.random.normal(ks[0], (B, C_in, T), jnp.float32)
    conv1_v = _xavier_uniform(ks[1], (C_out, C_in, K))
    conv1_g = jax.random.uniform(ks[2], (C_out,), jnp.float32, minval=0.5, maxval=1.5)
    conv1_b = jax.random.uniform(ks[3], (C_out,), jnp.float32, minval=-0.1, maxval=0.1)
    conv2_v = _xavier_uniform(ks[4], (C_out, C_out, K))
    conv2_g = jax.random.uniform(ks[5], (C_out,), jnp.float32, minval=0.5, maxval=1.5)
    conv2_b = jax.random.uniform(ks[6], (C_out,), jnp.float32, minval=-0.1, maxval=0.1)
    down_w = _xavier_uniform(ks[7], (C_out, C_in, 1))       # C_in != C_out -> downsample
    down_b = jax.random.uniform(ks[8], (C_out,), jnp.float32, minval=-0.1, maxval=0.1)

    y = temporal_block(x, conv1_v, conv1_g, conv1_b, conv2_v, conv2_g, conv2_b,
                       down_w, down_b,
                       kernel_size=K, dilation=dilation, padding=padding)
    y = jax.block_until_ready(y)

    ref = _reference(x, conv1_v, conv1_g, conv1_b, conv2_v, conv2_g, conv2_b,
                     down_w, down_b, K, dilation, padding)

    assert y.shape == (B, C_out, T)
    # bf16 MXU operands with f32 accumulation: compare against the pure-f32
    # reference with a normalized max-error criterion.
    err = float(jnp.max(jnp.abs(y - ref)) / (jnp.max(jnp.abs(ref)) + 1e-6))
    assert err < 5e-2, err

    print("KERNEL_OK")
</pallas_src>

<mosaic_0001>
module attributes {stable_mosaic.version = 11 : i64} {
  func.func @_temporal_block_kernel(%arg0: i32, %arg1: memref<1x28x128xbf16, #tpu.memory_space<vmem>>, %arg2: memref<384x128xbf16, #tpu.memory_space<vmem>>, %arg3: memref<1x128xf32, #tpu.memory_space<vmem>>, %arg4: memref<384x128xbf16, #tpu.memory_space<vmem>>, %arg5: memref<1x128xf32, #tpu.memory_space<vmem>>, %arg6: memref<128x128xbf16, #tpu.memory_space<vmem>>, %arg7: memref<1x128xf32, #tpu.memory_space<vmem>>, %arg8: memref<1x24x128xf32, #tpu.memory_space<vmem>>, %arg9: memref<1x28x128xbf16, #tpu.memory_space<vmem>>) attributes {dimension_semantics = [#tpu.dimension_semantics<parallel>], iteration_bounds = array<i64: 2>, scalar_prefetch = 0 : i64, scratch_operands = 1 : i64, tpu.core_type = #tpu.core_type<tc>, window_params = [{transform_indices = @transform_0, window_bounds = array<i64: 1, 28, 128>}, {pipeline_mode = #tpu.pipeline_mode<synchronous>, transform_indices = @transform_1, window_bounds = array<i64: 384, 128>}, {pipeline_mode = #tpu.pipeline_mode<synchronous>, transform_indices = @transform_2, window_bounds = array<i64: 1, 128>}, {pipeline_mode = #tpu.pipeline_mode<synchronous>, transform_indices = @transform_3, window_bounds = array<i64: 384, 128>}, {pipeline_mode = #tpu.pipeline_mode<synchronous>, transform_indices = @transform_4, window_bounds = array<i64: 1, 128>}, {pipeline_mode = #tpu.pipeline_mode<synchronous>, transform_indices = @transform_5, window_bounds = array<i64: 128, 128>}, {pipeline_mode = #tpu.pipeline_mode<synchronous>, transform_indices = @transform_6, window_bounds = array<i64: 1, 128>}, {transform_indices = @transform_7, window_bounds = array<i64: 1, 24, 128>}]} {
    %c0 = arith.constant 0 : index
    %c0_0 = arith.constant 0 : index
    %c0_1 = arith.constant 0 : index
    %0 = vector.load %arg1[%c0, %c0_0, %c0_1] : memref<1x28x128xbf16, #tpu.memory_space<vmem>>, vector<1x24x128xbf16>
    %c0_2 = arith.constant 0 : index
    %c2 = arith.constant 2 : index
    %c0_3 = arith.constant 0 : index
    %1 = vector.load %arg1[%c0_2, %c2, %c0_3] : memref<1x28x128xbf16, #tpu.memory_space<vmem>>, vector<1x24x128xbf16>
    %c0_4 = arith.constant 0 : index
    %c4 = arith.constant 4 : index
    %c0_5 = arith.constant 0 : index
    %2 = vector.load %arg1[%c0_4, %c4, %c0_5] : memref<1x28x128xbf16, #tpu.memory_space<vmem>>, vector<1x24x128xbf16>
    %3 = tpu.concatenate %0, %1, %2 in 2 : vector<1x24x128xbf16>, vector<1x24x128xbf16>, vector<1x24x128xbf16> -> vector<1x24x384xbf16>
    %4 = vector.shape_cast %3 : vector<1x24x384xbf16> to vector<24x384xbf16>
    %c0_6 = arith.constant 0 : index
    %c0_7 = arith.constant 0 : index
    %5 = vector.load %arg2[%c0_6, %c0_7] : memref<384x128xbf16, #tpu.memory_space<vmem>>, vector<384x128xbf16>
    %cst = arith.constant dense<0.000000e+00> : vector<24x128xf32>
    %6 = tpu.matmul %4, %5, %cst {dimension_numbers = #tpu.dot_dimension_numbers<[1], [0], [0], [1], [0, 0, 1, 1], [], []>} : vector<24x384xbf16>, vector<384x128xbf16>, vector<24x128xf32> -> vector<24x128xf32>
    %c0_8 = arith.constant 0 : index
    %c0_9 = arith.constant 0 : index
    %7 = vector.load %arg3[%c0_8, %c0_9] : memref<1x128xf32, #tpu.memory_space<vmem>>, vector<1x128xf32>
    %8 = vector.broadcast %7 : vector<1x128xf32> to vector<24x128xf32>
    %9 = arith.addf %6, %8 : vector<24x128xf32>
    %cst_10 = arith.constant 0.000000e+00 : f32
    %10 = vector.broadcast %cst_10 : f32 to vector<24x128xf32>
    %11 = arith.maximumf %9, %10 : vector<24x128xf32>
    %cst_11 = arith.constant 0.000000e+00 : bf16
    %12 = vector.broadcast %cst_11 : bf16 to vector<1x4x128xbf16>
    %c0_12 = arith.constant 0 : index
    %c0_13 = arith.constant 0 : index
    %c0_14 = arith.constant 0 : index
    %13 = vector.load %arg9[%c0_12, %c0_13, %c0_14] : memref<1x28x128xbf16, #tpu.memory_space<vmem>>, vector<1x4x128xbf16>
    tpu.vector_store %arg9[%c0_12, %c0_13, %c0_14], %12 {strides = array<i32>} : memref<1x28x128xbf16, #tpu.memory_space<vmem>>, vector<1x4x128xbf16>,
    %14 = vector.shape_cast %11 : vector<24x128xf32> to vector<1x24x128xf32>
    %15 = arith.truncf %14 : vector<1x24x128xf32> to vector<1x24x128xbf16>
    %c0_15 = arith.constant 0 : index
    %c4_16 = arith.constant 4 : index
    %c0_17 = arith.constant 0 : index
    %16 = vector.load %arg9[%c0_15, %c4_16, %c0_17] : memref<1x28x128xbf16, #tpu.memory_space<vmem>>, vector<1x24x128xbf16>
    tpu.vector_store %arg9[%c0_15, %c4_16, %c0_17], %15 {strides = array<i32>} : memref<1x28x128xbf16, #tpu.memory_space<vmem>>, vector<1x24x128xbf16>,
    %c0_18 = arith.constant 0 : index
    %c0_19 = arith.constant 0 : index
    %c0_20 = arith.constant 0 : index
    %17 = vector.load %arg9[%c0_18, %c0_19, %c0_20] : memref<1x28x128xbf16, #tpu.memory_space<vmem>>, vector<1x24x128xbf16>
    %c0_21 = arith.constant 0 : index
    %c2_22 = arith.constant 2 : index
    %c0_23 = arith.constant 0 : index
    %18 = vector.load %arg9[%c0_21, %c2_22, %c0_23] : memref<1x28x128xbf16, #tpu.memory_space<vmem>>, vector<1x24x128xbf16>
    %c0_24 = arith.constant 0 : index
    %c4_25 = arith.constant 4 : index
    %c0_26 = arith.constant 0 : index
    %19 = vector.load %arg9[%c0_24, %c4_25, %c0_26] : memref<1x28x128xbf16, #tpu.memory_space<vmem>>, vector<1x24x128xbf16>
    %20 = tpu.concatenate %17, %18, %19 in 2 : vector<1x24x128xbf16>, vector<1x24x128xbf16>, vector<1x24x128xbf16> -> vector<1x24x384xbf16>
    %21 = vector.shape_cast %20 : vector<1x24x384xbf16> to vector<24x384xbf16>
    %c0_27 = arith.constant 0 : index
    %c0_28 = arith.constant 0 : index
    %22 = vector.load %arg4[%c0_27, %c0_28] : memref<384x128xbf16, #tpu.memory_space<vmem>>, vector<384x128xbf16>
    %cst_29 = arith.constant dense<0.000000e+00> : vector<24x128xf32>
    %23 = tpu.matmul %21, %22, %cst_29 {dimension_numbers = #tpu.dot_dimension_numbers<[1], [0], [0], [1], [0, 0, 1, 1], [], []>} : vector<24x384xbf16>, vector<384x128xbf16>, vector<24x128xf32> -> vector<24x128xf32>
    %c0_30 = arith.constant 0 : index
    %c0_31 = arith.constant 0 : index
    %24 = vector.load %arg5[%c0_30, %c0_31] : memref<1x128xf32, #tpu.memory_space<vmem>>, vector<1x128xf32>
    %25 = vector.broadcast %24 : vector<1x128xf32> to vector<24x128xf32>
    %26 = arith.addf %23, %25 : vector<24x128xf32>
    %cst_32 = arith.constant 0.000000e+00 : f32
    %27 = vector.broadcast %cst_32 : f32 to vector<24x128xf32>
    %28 = arith.maximumf %26, %27 : vector<24x128xf32>
    %c0_33 = arith.constant 0 : index
    %c4_34 = arith.constant 4 : index
    %c0_35 = arith.constant 0 : index
    %29 = vector.load %arg1[%c0_33, %c4_34, %c0_35] : memref<1x28x128xbf16, #tpu.memory_space<vmem>>, vector<1x24x128xbf16>
    %30 = vector.shape_cast %29 : vector<1x24x128xbf16> to vector<24x128xbf16>
    %c0_36 = arith.constant 0 : index
    %c0_37 = arith.constant 0 : index
    %31 = vector.load %arg6[%c0_36, %c0_37] : memref<128x128xbf16, #tpu.memory_space<vmem>>, vector<128x128xbf16>
    %cst_38 = arith.constant dense<0.000000e+00> : vector<24x128xf32>
    %32 = tpu.matmul %30, %31, %cst_38 {dimension_numbers = #tpu.dot_dimension_numbers<[1], [0], [0], [1], [0, 0, 1, 1], [], []>} : vector<24x128xbf16>, vector<128x128xbf16>, vector<24x128xf32> -> vector<24x128xf32>
    %c0_39 = arith.constant 0 : index
    %c0_40 = arith.constant 0 : index
    %33 = vector.load %arg7[%c0_39, %c0_40] : memref<1x128xf32, #tpu.memory_space<vmem>>, vector<1x128xf32>
    %34 = vector.broadcast %33 : vector<1x128xf32> to vector<24x128xf32>
    %35 = arith.addf %32, %34 : vector<24x128xf32>
    %36 = arith.addf %28, %35 : vector<24x128xf32>
    %cst_41 = arith.constant 0.000000e+00 : f32
    %37 = vector.broadcast %cst_41 : f32 to vector<24x128xf32>
    %38 = arith.maximumf %36, %37 : vector<24x128xf32>
    %39 = vector.shape_cast %38 : vector<24x128xf32> to vector<1x24x128xf32>
    %c0_42 = arith.constant 0 : index
    %c0_43 = arith.constant 0 : index
    %c0_44 = arith.constant 0 : index
    %40 = vector.load %arg8[%c0_42, %c0_43, %c0_44] : memref<1x24x128xf32, #tpu.memory_space<vmem>>, vector<1x24x128xf32>
    tpu.vector_store %arg8[%c0_42, %c0_43, %c0_44], %39 {strides = array<i32>} : memref<1x24x128xf32, #tpu.memory_space<vmem>>, vector<1x24x128xf32>,
    return
  }
  func.func @transform_0(%arg0: i32) -> (i32, i32, i32) {
    %c0_i32 = arith.constant 0 : i32
    %c0_i32_0 = arith.constant 0 : i32
    %c0_i32_1 = arith.constant 0 : i32
    return %arg0, %c0_i32, %c0_i32_0 : i32, i32, i32
  }
  func.func @transform_1(%arg0: i32) -> (i32, i32) {
    %c0_i32 = arith.constant 0 : i32
    %c0_i32_0 = arith.constant 0 : i32
    %c0_i32_1 = arith.constant 0 : i32
    return %c0_i32, %c0_i32_0 : i32, i32
  }
  func.func @transform_2(%arg0: i32) -> (i32, i32) {
    %c0_i32 = arith.constant 0 : i32
    %c0_i32_0 = arith.constant 0 : i32
    %c0_i32_1 = arith.constant 0 : i32
    return %c0_i32, %c0_i32_0 : i32, i32
  }
  func.func @transform_3(%arg0: i32) -> (i32, i32) {
    %c0_i32 = arith.constant 0 : i32
    %c0_i32_0 = arith.constant 0 : i32
    %c0_i32_1 = arith.constant 0 : i32
    return %c0_i32, %c0_i32_0 : i32, i32
  }
  func.func @transform_4(%arg0: i32) -> (i32, i32) {
    %c0_i32 = arith.constant 0 : i32
    %c0_i32_0 = arith.constant 0 : i32
    %c0_i32_1 = arith.constant 0 : i32
    return %c0_i32, %c0_i32_0 : i32, i32
  }
  func.func @transform_5(%arg0: i32) -> (i32, i32) {
    %c0_i32 = arith.constant 0 : i32
    %c0_i32_0 = arith.constant 0 : i32
    %c0_i32_1 = arith.constant 0 : i32
    return %c0_i32, %c0_i32_0 : i32, i32
  }
  func.func @transform_6(%arg0: i32) -> (i32, i32) {
    %c0_i32 = arith.constant 0 : i32
    %c0_i32_0 = arith.constant 0 : i32
    %c0_i32_1 = arith.constant 0 : i32
    return %c0_i32, %c0_i32_0 : i32, i32
  }
  func.func @transform_7(%arg0: i32) -> (i32, i32, i32) {
    %c0_i32 = arith.constant 0 : i32
    %c0_i32_0 = arith.constant 0 : i32
    %c0_i32_1 = arith.constant 0 : i32
    return %arg0, %c0_i32, %c0_i32_0 : i32, i32, i32
  }
}

</mosaic_0001>

<llo_original>
// kernel: tpu_custom_call.1
$region0: #{tpu_custom_call.1}
  #allocation0 [shape = 'u32[]', space=smem, size = 0x4, offset = 0x4, fixed_abs, tag = 'smem constant byte address 0x4 - core index']
  #allocation1 [shape = 'u32[144,128]{1,0:T(1,128)}', space=vmem, size = 0x12000, scoped, tag = 'internal scratch']
  #allocation2 [shape = 'bf16[1,28,128]{2,1,0:T(8,128)(2,1)}', space=vmem, size = 0x2000, scoped, tag = 'scratch operand']
  %s0 = inlined_call_operand.vmem [shape: bf16[2,28,128], index: 0, kind: input, shape index: {}]
  %s1 = inlined_call_operand.hbm [shape: bf16[384,128], index: 1, kind: input, shape index: {}]
  %s2 = inlined_call_operand.vmem [shape: f32[1,128], index: 2, kind: input, shape index: {}]
  %s3 = inlined_call_operand.hbm [shape: bf16[384,128], index: 3, kind: input, shape index: {}]
  %s4 = inlined_call_operand.vmem [shape: f32[1,128], index: 4, kind: input, shape index: {}]
  %s5 = inlined_call_operand.vmem [shape: bf16[128,128], index: 5, kind: input, shape index: {}]
  %s6 = inlined_call_operand.vmem [shape: f32[1,128], index: 6, kind: input, shape index: {}]
  %s7 = inlined_call_operand.hbm [shape: f32[2,24,128], index: 7, kind: output, shape index: {}]
  %s8 = sld [smem:[#allocation0]]
  $region69: #{tpu_custom_call.1} parent=0
    _
  %s10 = ssub.s32 1, %s8
  %s11 = scalar_select 0, %s10, %s8
  $region1: #{tpu_custom_call.1} parent=0
    #allocation3 [shape = 'u8[98304]{0}', space=vmem, size = 0x18000, scoped, tag = 'input window, operand 1, single buffered']
    #allocation4 [shape = 's32[2]{0}', space=sflag, size = 0x8, scoped, tag = 'scoped memory for tpu_custom_call.1']
    #allocation5 [shape = 's32[2]{0}', space=sflag, size = 0x8, scoped, tag = 'scoped memory for tpu_custom_call.1']
    #allocation6 [shape = 'u8[98304]{0}', space=vmem, size = 0x18000, scoped, tag = 'input window, operand 3, single buffered']
    #allocation7 [shape = 's32[1]{0}', space=sflag, size = 0x4, scoped, tag = 'scoped memory for tpu_custom_call.1']
    #allocation8 [shape = 'u8[24576]{0}', space=vmem, size = 0x6000, scoped, tag = 'output window, operand 0']
    %12 = vsyncpa [#allocation4], 0
    %13 = vsyncpa [#allocation7], 0
    %14 = vsyncpa [#allocation5], 0
    %s15 = scalar_lea.sflag [#allocation5], 1
    %16 = vsyncpa %s15, 0
    loop: start=0, step=1, limit=4
    $region2: #{tpu_custom_call.1} parent=1 // loop_pre_header
      _
    $region3: #{tpu_custom_call.1} parent=1 // loop_header
      %s18 = sphi 0, %s22
      %p19 = scmp.ge.s32.totalorder %s18, 4
      %s28 = sphi 0, %s30
      %s31 = sphi 0, %s28
      %s32 = sphi 0, %s31
      %s48 = sphi 0, %s32
      %s52 = sphi 0, %s52
      %s54 = sphi 0, %s52
      %s55 = sphi 0, %s54
      %s69 = sphi 0, %s55
      %s73 = sphi 0, %s73
      %s75 = sphi 0, %s73
      %s76 = sphi 0, %s75
      %s90 = sphi 0, %s76
      %s94 = sphi 0, %s94
      %s96 = sphi 0, %s94
      %s97 = sphi 0, %s96
      %s111 = sphi 0, %s97
      %s115 = sphi 0, %s115
      %s117 = sphi 0, %s115
      %s118 = sphi 0, %s117
      %s132 = sphi 0, %s118
      %s136 = sphi 0, %s136
      %s138 = sphi 0, %s136
      %s139 = sphi 0, %s138
      %s153 = sphi 0, %s139
      %s157 = sphi 0, %s157
      %s159 = sphi 0, %s157
      %s160 = sphi 0, %s159
      %s174 = sphi 0, %s160
      %s180 = sphi 0, %s182
      %s183 = sphi 0, %s180
      %s184 = sphi 0, %s183
      %s200 = sphi 0, %s184
    $region4: #{tpu_custom_call.1} parent=1 // loop_header_branch
      %21 = sbr.rel (%p19) target = $region8
    $region5: #{tpu_custom_call.1} parent=1 // loop_body
      %s23 = ssub.s32 %s18, 1
      %s24 = ssub.s32 %s18, 2
      %s25 = sadd.s32 %s18, 1
      %s26 = ssub.s32 %s18, %s25
      %p27 = scmp.eq.s32.totalorder %s26, 0
      %s29 = sadd.s32 %s28, 1
      %s30 = scalar_select %p27, %s28, %s29
      %p33 = pneg %p27
      %p34 = scmp.eq.s32.totalorder %s18, 1
      %p35 = por %p33, %p34
      %p36 = scmp.ne.s32.totalorder %s28, %s31
      %p37 = scmp.eq.s32.totalorder %s18, 0
      %p38 = por %p36, %p37
      %p39 = scmp.ne.s32.totalorder %s28, %s31
      %p40 = scmp.eq.s32.totalorder %s23, 1
      %p41 = por %p39, %p40
      %p42 = scmp.ne.s32.totalorder %s31, %s32
      %p43 = scmp.eq.s32.totalorder %s23, 0
      %p44 = por %p42, %p43
      %p45 = scmp.ne.s32.totalorder %s31, %s32
      %p46 = scmp.eq.s32.totalorder %s24, 1
      %p47 = por %p45, %p46
      %p49 = scmp.ne.s32.totalorder %s32, %s48
      %p50 = scmp.eq.s32.totalorder %s24, 0
      %p51 = por %p49, %p50
      %s53 = sadd.s32 %s52, 1
      %p56 = scmp.eq.s32.totalorder %s18, 1
      %p57 = scmp.ne.s32.totalorder %s52, %s54
      %p58 = scmp.eq.s32.totalorder %s18, 0
      %p59 = por %p57, %p58
      %p60 = scmp.ne.s32.totalorder %s52, %s54
      %p61 = scmp.eq.s32.totalorder %s23, 1
      %p62 = por %p60, %p61
      %p63 = scmp.ne.s32.totalorder %s54, %s55
      %p64 = scmp.eq.s32.totalorder %s23, 0
      %p65 = por %p63, %p64
      %p66 = scmp.ne.s32.totalorder %s54, %s55
      %p67 = scmp.eq.s32.totalorder %s24, 1
      %p68 = por %p66, %p67
      %p70 = scmp.ne.s32.totalorder %s55, %s69
      %p71 = scmp.eq.s32.totalorder %s24, 0
      %p72 = por %p70, %p71
      %s74 = sadd.s32 %s73, 1
      %p77 = scmp.eq.s32.totalorder %s18, 1
      %p78 = scmp.ne.s32.totalorder %s73, %s75
      %p79 = scmp.eq.s32.totalorder %s18, 0
      %p80 = por %p78, %p79
      %p81 = scmp.ne.s32.totalorder %s73, %s75
      %p82 = scmp.eq.s32.totalorder %s23, 1
      %p83 = por %p81, %p82
      %p84 = scmp.ne.s32.totalorder %s75, %s76
      %p85 = scmp.eq.s32.totalorder %s23, 0
      %p86 = por %p84, %p85
      %p87 = scmp.ne.s32.totalorder %s75, %s76
      %p88 = scmp.eq.s32.totalorder %s24, 1
      %p89 = por %p87, %p88
      %p91 = scmp.ne.s32.totalorder %s76, %s90
      %p92 = scmp.eq.s32.totalorder %s24, 0
      %p93 = por %p91, %p92
      %s95 = sadd.s32 %s94, 1
      %p98 = scmp.eq.s32.totalorder %s18, 1
      %p99 = scmp.ne.s32.totalorder %s94, %s96
      %p100 = scmp.eq.s32.totalorder %s18, 0
      %p101 = por %p99, %p100
      %p102 = scmp.ne.s32.totalorder %s94, %s96
      %p103 = scmp.eq.s32.totalorder %s23, 1
      %p104 = por %p102, %p103
      %p105 = scmp.ne.s32.totalorder %s96, %s97
      %p106 = scmp.eq.s32.totalorder %s23, 0
      %p107 = por %p105, %p106
      %p108 = scmp.ne.s32.totalorder %s96, %s97
      %p109 = scmp.eq.s32.totalorder %s24, 1
      %p110 = por %p108, %p109
      %p112 = scmp.ne.s32.totalorder %s97, %s111
      %p113 = scmp.eq.s32.totalorder %s24, 0
      %p114 = por %p112, %p113
      %s116 = sadd.s32 %s115, 1
      %p119 = scmp.eq.s32.totalorder %s18, 1
      %p120 = scmp.ne.s32.totalorder %s115, %s117
      %p121 = scmp.eq.s32.totalorder %s18, 0
      %p122 = por %p120, %p121
      %p123 = scmp.ne.s32.totalorder %s115, %s117
      %p124 = scmp.eq.s32.totalorder %s23, 1
      %p125 = por %p123, %p124
      %p126 = scmp.ne.s32.totalorder %s117, %s118
      %p127 = scmp.eq.s32.totalorder %s23, 0
      %p128 = por %p126, %p127
      %p129 = scmp.ne.s32.totalorder %s117, %s118
      %p130 = scmp.eq.s32.totalorder %s24, 1
      %p131 = por %p129, %p130
      %p133 = scmp.ne.s32.totalorder %s118, %s132
      %p134 = scmp.eq.s32.totalorder %s24, 0
      %p135 = por %p133, %p134
      %s137 = sadd.s32 %s136, 1
      %p140 = scmp.eq.s32.totalorder %s18, 1
      %p141 = scmp.ne.s32.totalorder %s136, %s138
      %p142 = scmp.eq.s32.totalorder %s18, 0
      %p143 = por %p141, %p142
      %p144 = scmp.ne.s32.totalorder %s136, %s138
      %p145 = scmp.eq.s32.totalorder %s23, 1
      %p146 = por %p144, %p145
      %p147 = scmp.ne.s32.totalorder %s138, %s139
      %p148 = scmp.eq.s32.totalorder %s23, 0
      %p149 = por %p147, %p148
      %p150 = scmp.ne.s32.totalorder %s138, %s139
      %p151 = scmp.eq.s32.totalorder %s24, 1
      %p152 = por %p150, %p151
      %p154 = scmp.ne.s32.totalorder %s139, %s153
      %p155 = scmp.eq.s32.totalorder %s24, 0
      %p156 = por %p154, %p155
      %s158 = sadd.s32 %s157, 1
      %p161 = scmp.eq.s32.totalorder %s18, 1
      %p162 = scmp.ne.s32.totalorder %s157, %s159
      %p163 = scmp.eq.s32.totalorder %s18, 0
      %p164 = por %p162, %p163
      %p165 = scmp.ne.s32.totalorder %s157, %s159
      %p166 = scmp.eq.s32.totalorder %s23, 1
      %p167 = por %p165, %p166
      %p168 = scmp.ne.s32.totalorder %s159, %s160
      %p169 = scmp.eq.s32.totalorder %s23, 0
      %p170 = por %p168, %p169
      %p171 = scmp.ne.s32.totalorder %s159, %s160
      %p172 = scmp.eq.s32.totalorder %s24, 1
      %p173 = por %p171, %p172
      %p175 = scmp.ne.s32.totalorder %s160, %s174
      %p176 = scmp.eq.s32.totalorder %s24, 0
      %p177 = por %p175, %p176
      %s178 = ssub.s32 %s18, %s25
      %p179 = scmp.eq.s32.totalorder %s178, 0
      %s181 = sadd.s32 %s180, 1
      %s182 = scalar_select %p179, %s180, %s181
      %p185 = pneg %p179
      %p186 = scmp.eq.s32.totalorder %s18, 1
      %p187 = por %p185, %p186
      %p188 = scmp.ne.s32.totalorder %s180, %s183
      %p189 = scmp.eq.s32.totalorder %s18, 0
      %p190 = por %p188, %p189
      %p191 = scmp.ne.s32.totalorder %s180, %s183
      %p192 = scmp.eq.s32.totalorder %s23, 1
      %p193 = por %p191, %p192
      %p194 = scmp.ne.s32.totalorder %s183, %s184
      %p195 = scmp.eq.s32.totalorder %s23, 0
      %p196 = por %p194, %p195
      %p197 = scmp.ne.s32.totalorder %s183, %s184
      %p198 = scmp.eq.s32.totalorder %s24, 1
      %p199 = por %p197, %p198
      %p201 = scmp.ne.s32.totalorder %s184, %s200
      %p202 = scmp.eq.s32.totalorder %s24, 0
      %p203 = por %p201, %p202
      %p204 = scmp.le.s32.totalorder 1, %s18
      %p205 = scmp.lt.s32.totalorder %s18, 3
      %p206 = pnand %p204, %p205
      %p207 = pneg %p206
      // Predicated region
      $region9: #{tpu_custom_call.1} parent=5 // pred_check
        _
      $region10: #{tpu_custom_call.1} parent=5 // pred_check_branch
        %209 = sbr.rel (%p206) target = $region12
      $region11: #{tpu_custom_call.1} parent=5 // pred_region
        %s210 = ssub.s32 %s18, 1
        // Predicated region
        $region13: #{tpu_custom_call.1} parent=11 // pred_check
          %p211 = pneg %p65
        $region14: #{tpu_custom_call.1} parent=11 // pred_check_branch
          %213 = sbr.rel (%p211) target = $region16
        $region15: #{tpu_custom_call.1} parent=11 // pred_region
          %s215 = ssub.s32 3072, 3072
          %216 = vsyncadd [#allocation4], %s215
          %s217 = sshll.u32 [#allocation3], 4
          %s218 = int_to_ptr.vmem [resolvable:$true] %s217
          %223 = dma.hbm_to_vmem [thread:$0]  %s1, 3072, %s218, [#allocation4], 64, 64, 4
        $region16: #{tpu_custom_call.1} parent=11 // pred_fallthru
          _
        // Predicated region
        $region17: #{tpu_custom_call.1} parent=11 // pred_check
          %p224 = pneg %p86
        $region18: #{tpu_custom_call.1} parent=11 // pred_check_branch
          %226 = sbr.rel (%p224) target = $region20
        $region19: #{tpu_custom_call.1} parent=11 // pred_region
          _
        $region20: #{tpu_custom_call.1} parent=11 // pred_fallthru
          _
        // Predicated region
        $region21: #{tpu_custom_call.1} parent=11 // pred_check
          %p227 = pneg %p107
        $region22: #{tpu_custom_call.1} parent=11 // pred_check_branch
          %229 = sbr.rel (%p227) target = $region24
        $region23: #{tpu_custom_call.1} parent=11 // pred_region
          %s231 = ssub.s32 3072, 3072
          %232 = vsyncadd [#allocation7], %s231
          %s233 = sshll.u32 [#allocation6], 4
          %s234 = int_to_ptr.vmem [resolvable:$true] %s233
          %239 = dma.hbm_to_vmem [thread:$0]  %s3, 3072, %s234, [#allocation7], 64, 64, 4
        $region24: #{tpu_custom_call.1} parent=11 // pred_fallthru
          _
        // Predicated region
        $region25: #{tpu_custom_call.1} parent=11 // pred_check
          %p240 = pneg %p128
        $region26: #{tpu_custom_call.1} parent=11 // pred_check_branch
          %242 = sbr.rel (%p240) target = $region28
        $region27: #{tpu_custom_call.1} parent=11 // pred_region
          _
        $region28: #{tpu_custom_call.1} parent=11 // pred_fallthru
          _
        // Predicated region
        $region29: #{tpu_custom_call.1} parent=11 // pred_check
          %p243 = pneg %p149
        $region30: #{tpu_custom_call.1} parent=11 // pred_check_branch
          %245 = sbr.rel (%p243) target = $region32
        $region31: #{tpu_custom_call.1} parent=11 // pred_region
          _
        $region32: #{tpu_custom_call.1} parent=11 // pred_fallthru
          _
        // Predicated region
        $region33: #{tpu_custom_call.1} parent=11 // pred_check
          %p246 = pneg %p170
        $region34: #{tpu_custom_call.1} parent=11 // pred_check_branch
          %248 = sbr.rel (%p246) target = $region36
        $region35: #{tpu_custom_call.1} parent=11 // pred_region
          _
        $region36: #{tpu_custom_call.1} parent=11 // pred_fallthru
          _
      $region12: #{tpu_custom_call.1} parent=5 // pred_fallthru
        _
      %p249 = scmp.lt.s32.totalorder %s18, 2
      // Predicated region
      $region37: #{tpu_custom_call.1} parent=5 // pred_check
        %p250 = pneg %p249
      $region38: #{tpu_custom_call.1} parent=5 // pred_check_branch
        %252 = sbr.rel (%p250) target = $region40
      $region39: #{tpu_custom_call.1} parent=5 // pred_region
        // Predicated region
        $region41: #{tpu_custom_call.1} parent=39 // pred_check
          %p253 = pneg %p38
        $region42: #{tpu_custom_call.1} parent=39 // pred_check_branch
          %255 = sbr.rel (%p253) target = $region44
        $region43: #{tpu_custom_call.1} parent=39 // pred_region
          %p256 = scmp.lt.s32.totalorder %s18, 1
          %s257 = scalar_select %p256, %s18, 1
          %s258 = smul.addr %s257, 4
          %s259 = smul.addr %s258, 4
          %s260 = scalar_lea.vmem %s0, %s259
        $region44: #{tpu_custom_call.1} parent=39 // pred_fallthru
          _
      $region40: #{tpu_custom_call.1} parent=5 // pred_fallthru
        _
      %p261 = scmp.le.s32.totalorder 1, %s18
      %p262 = scmp.lt.s32.totalorder %s18, 3
      %p263 = pnand %p261, %p262
      %p264 = pneg %p263
      // Predicated region
      $region45: #{tpu_custom_call.1} parent=5 // pred_check
        _
      $region46: #{tpu_custom_call.1} parent=5 // pred_check_branch
        %266 = sbr.rel (%p263) target = $region48
      $region47: #{tpu_custom_call.1} parent=5 // pred_region
        %s267 = ssub.s32 %s18, 1
        // Predicated region
        $region49: #{tpu_custom_call.1} parent=47 // pred_check
          %p268 = pneg %p65
        $region50: #{tpu_custom_call.1} parent=47 // pred_check_branch
          %270 = sbr.rel (%p268) target = $region52
        $region51: #{tpu_custom_call.1} parent=47 // pred_region
          %271 = dma.done [#allocation4], 3072
        $region52: #{tpu_custom_call.1} parent=47 // pred_fallthru
          _
        // Predicated region
        $region53: #{tpu_custom_call.1} parent=47 // pred_check
          %p272 = pneg %p107
        $region54: #{tpu_custom_call.1} parent=47 // pred_check_branch
          %274 = sbr.rel (%p272) target = $region56
        $region55: #{tpu_custom_call.1} parent=47 // pred_region
          %275 = dma.done [#allocation7], 3072
        $region56: #{tpu_custom_call.1} parent=47 // pred_fallthru
          _
        %p276 = scmp.lt.s32.totalorder %s23, 1
        %s277 = scalar_select %p276, %s23, 1
        %s278 = smul.addr %s277, 4
        %s279 = smul.addr %s278, 4
        %s280 = scalar_lea.vmem %s0, %s279
        %p281 = pneg %p44
        %p282 = pneg %p41
        %p283 = pneg %p65
        %p284 = pneg %p62
        %p285 = pneg %p86
        %p286 = pneg %p83
        %p287 = pneg %p107
        %p288 = pneg %p104
        %p289 = pneg %p128
        %p290 = pneg %p125
        %p291 = pneg %p149
        %p292 = pneg %p146
        %p293 = pneg %p170
        %p294 = pneg %p167
        %p295 = pneg %p196
        %p296 = pneg %p193
        %s297 = sand.u32 %s183, 1
        %s298 = scalar_lea.sflag [#allocation5], %s297
        %s299 = sand.u32 %s183, 1
        %s300 = smul.addr %s299, 24
        %s301 = scalar_lea.vmem [#allocation8], %s300
        %p302 = scmp.lt.s32.totalorder %s23, 1
        %s303 = scalar_select %p302, %s23, 1
        %s304 = smul.addr %s303, 4
        %s305 = smul.addr %s304, 4
        %s306 = scalar_lea.vmem %s0, %s305
        %v308 = vld [vmem:[%s306] sm:$0xf]
        %v309 = vld [vmem:[%s306 + $0x4] sm:$0xf]
        %v310 = vld [vmem:[%s306 + $0x8] sm:$0xf]
        %v311 = vld [vmem:[%s306] sm:$0xe]
        %v312 = vld [vmem:[%s306 + $0xc] sm:$0x1]
        %v313 = vld [vmem:[%s306] sm:$0xc]
        %v314 = vld [vmem:[%s306 + $0xc] sm:$0x3]
        %v318 = vunpack.c.l.b16 %v308
        %v319 = vunpack.c.l.b16 %v309
        %v320 = vunpack.c.l.b16 %v310
        %v321 = vpack.c.b16 %v319, %v318
        %v322 = vpack.c.b16 %v320, %v320
        %v327 = vunpack.c.l.b16 %v311
        %v328 = vunpack.c.l.b16 %v312
        %v329 = vpack.c.b16 %v319, %v327
        %v330 = vpack.c.b16 %v328, %v320
        %vm331 = vcmask 1046528
        %v332 = vrot.slane %v329, 1
        %v333 = vrot.slane %v330, 1
        %v334 = vsel %vm331, %v332, %v333
        %v339 = vunpack.c.l.b16 %v313
        %v340 = vunpack.c.l.b16 %v314
        %v341 = vpack.c.b16 %v319, %v339
        %v342 = vpack.c.b16 %v340, %v320
        %vm343 = vcmask 1045504
        %v344 = vrot.slane %v341, 2
        %v345 = vrot.slane %v342, 2
        %v346 = vsel %vm343, %v344, %v345
        %v349 = vld [vmem:[#allocation3] sm:$0xf]
        %v350 = vld [vmem:[#allocation3 + $0x4] sm:$0xf]
        %v351 = vld [vmem:[#allocation3 + $0x8] sm:$0xf]
        %v352 = vld [vmem:[#allocation3 + $0xc] sm:$0xf]
        %v353 = vld [vmem:[#allocation3 + $0x10] sm:$0xf]
        %v354 = vld [vmem:[#allocation3 + $0x14] sm:$0xf]
        %v355 = vld [vmem:[#allocation3 + $0x18] sm:$0xf]
        %v356 = vld [vmem:[#allocation3 + $0x1c] sm:$0xf]
        %v357 = vld [vmem:[#allocation3 + $0x20] sm:$0xf]
        %v358 = vld [vmem:[#allocation3 + $0x24] sm:$0xf]
        %v359 = vld [vmem:[#allocation3 + $0x28] sm:$0xf]
        %v360 = vld [vmem:[#allocation3 + $0x2c] sm:$0xf]
        %v361 = vld [vmem:[#allocation3 + $0x30] sm:$0xf]
        %v362 = vld [vmem:[#allocation3 + $0x34] sm:$0xf]
        %v363 = vld [vmem:[#allocation3 + $0x38] sm:$0xf]
        %v364 = vld [vmem:[#allocation3 + $0x3c] sm:$0xf]
        %v365 = vld [vmem:[#allocation3 + $0x40] sm:$0xf]
        %v366 = vld [vmem:[#allocation3 + $0x44] sm:$0xf]
        %v367 = vld [vmem:[#allocation3 + $0x48] sm:$0xf]
        %v368 = vld [vmem:[#allocation3 + $0x4c] sm:$0xf]
        %v369 = vld [vmem:[#allocation3 + $0x50] sm:$0xf]
        %v370 = vld [vmem:[#allocation3 + $0x54] sm:$0xf]
        %v371 = vld [vmem:[#allocation3 + $0x58] sm:$0xf]
        %v372 = vld [vmem:[#allocation3 + $0x5c] sm:$0xf]
        %v373 = vld [vmem:[#allocation3 + $0x60] sm:$0xf]
        %v374 = vld [vmem:[#allocation3 + $0x64] sm:$0xf]
        %v375 = vld [vmem:[#allocation3 + $0x68] sm:$0xf]
        %v376 = vld [vmem:[#allocation3 + $0x6c] sm:$0xf]
        %v377 = vld [vmem:[#allocation3 + $0x70] sm:$0xf]
        %v378 = vld [vmem:[#allocation3 + $0x74] sm:$0xf]
        %v379 = vld [vmem:[#allocation3 + $0x78] sm:$0xf]
        %v380 = vld [vmem:[#allocation3 + $0x7c] sm:$0xf]
        %v381 = vld [vmem:[#allocation3 + $0x80] sm:$0xf]
        %v382 = vld [vmem:[#allocation3 + $0x84] sm:$0xf]
        %v383 = vld [vmem:[#allocation3 + $0x88] sm:$0xf]
        %v384 = vld [vmem:[#allocation3 + $0x8c] sm:$0xf]
        %v385 = vld [vmem:[#allocation3 + $0x90] sm:$0xf]
        %v386 = vld [vmem:[#allocation3 + $0x94] sm:$0xf]
        %v387 = vld [vmem:[#allocation3 + $0x98] sm:$0xf]
        %v388 = vld [vmem:[#allocation3 + $0x9c] sm:$0xf]
        %v389 = vld [vmem:[#allocation3 + $0xa0] sm:$0xf]
        %v390 = vld [vmem:[#allocation3 + $0xa4] sm:$0xf]
        %v391 = vld [vmem:[#allocation3 + $0xa8] sm:$0xf]
        %v392 = vld [vmem:[#allocation3 + $0xac] sm:$0xf]
        %v393 = vld [vmem:[#allocation3 + $0xb0] sm:$0xf]
        %v394 = vld [vmem:[#allocation3 + $0xb4] sm:$0xf]
        %v395 = vld [vmem:[#allocation3 + $0xb8] sm:$0xf]
        %v396 = vld [vmem:[#allocation3 + $0xbc] sm:$0xf]
        %v397 = vld [vmem:[%s2] sm:$0x1]
        %v399 = vlaneseq
        %v400 = vshrl.u32 %v399, 7
        %v401 = vsub.s32 0, %v400
        %v402 = vrot.slane %v397, %v401
        %v452 = vunpack.c.l.b16 %v349
        %v453 = vunpack.c.l.b16 %v350
        %v454 = vunpack.c.l.b16 %v351
        %v455 = vunpack.c.l.b16 %v352
        %v456 = vunpack.c.l.b16 %v353
        %v457 = vunpack.c.l.b16 %v354
        %v458 = vunpack.c.l.b16 %v355
        %v459 = vunpack.c.l.b16 %v356
        %v460 = vunpack.c.l.b16 %v357
        %v461 = vunpack.c.l.b16 %v358
        %v462 = vunpack.c.l.b16 %v359
        %v463 = vunpack.c.l.b16 %v360
        %v464 = vunpack.c.l.b16 %v361
        %v465 = vunpack.c.l.b16 %v362
        %v466 = vunpack.c.l.b16 %v363
        %v467 = vunpack.c.l.b16 %v364
        %v468 = vunpack.c.l.b16 %v365
        %v469 = vunpack.c.l.b16 %v366
        %v470 = vunpack.c.l.b16 %v367
        %v471 = vunpack.c.l.b16 %v368
        %v472 = vunpack.c.l.b16 %v369
        %v473 = vunpack.c.l.b16 %v370
        %v474 = vunpack.c.l.b16 %v371
        %v475 = vunpack.c.l.b16 %v372
        %v476 = vunpack.c.l.b16 %v373
        %v477 = vunpack.c.l.b16 %v374
        %v478 = vunpack.c.l.b16 %v375
        %v479 = vunpack.c.l.b16 %v376
        %v480 = vunpack.c.l.b16 %v377
        %v481 = vunpack.c.l.b16 %v378
        %v482 = vunpack.c.l.b16 %v379
        %v483 = vunpack.c.l.b16 %v380
        %v484 = vunpack.c.l.b16 %v381
        %v485 = vunpack.c.l.b16 %v382
        %v486 = vunpack.c.l.b16 %v383
        %v487 = vunpack.c.l.b16 %v384
        %v488 = vunpack.c.l.b16 %v385
        %v489 = vunpack.c.l.b16 %v386
        %v490 = vunpack.c.l.b16 %v387
        %v491 = vunpack.c.l.b16 %v388
        %v492 = vunpack.c.l.b16 %v389
        %v493 = vunpack.c.l.b16 %v390
        %v494 = vunpack.c.l.b16 %v391
        %v495 = vunpack.c.l.b16 %v392
        %v496 = vunpack.c.l.b16 %v393
        %v497 = vunpack.c.l.b16 %v394
        %v498 = vunpack.c.l.b16 %v395
        %v499 = vunpack.c.l.b16 %v396
        %v500 = vpack.c.b16 %v453, %v452
        %v501 = vpack.c.b16 %v455, %v454
        %v502 = vpack.c.b16 %v457, %v456
        %v503 = vpack.c.b16 %v459, %v458
        %v504 = vpack.c.b16 %v461, %v460
        %v505 = vpack.c.b16 %v463, %v462
        %v506 = vpack.c.b16 %v465, %v464
        %v507 = vpack.c.b16 %v467, %v466
        %v508 = vpack.c.b16 %v469, %v468
        %v509 = vpack.c.b16 %v471, %v470
        %v510 = vpack.c.b16 %v473, %v472
        %v511 = vpack.c.b16 %v475, %v474
        %v512 = vpack.c.b16 %v477, %v476
        %v513 = vpack.c.b16 %v479, %v478
        %v514 = vpack.c.b16 %v481, %v480
        %v515 = vpack.c.b16 %v483, %v482
        %v516 = vpack.c.b16 %v485, %v484
        %v517 = vpack.c.b16 %v487, %v486
        %v518 = vpack.c.b16 %v489, %v488
        %v519 = vpack.c.b16 %v491, %v490
        %v520 = vpack.c.b16 %v493, %v492
        %v521 = vpack.c.b16 %v495, %v494
        %v522 = vpack.c.b16 %v497, %v496
        %v523 = vpack.c.b16 %v499, %v498
        %548 = vmatprep.subr.bf16.mxu0 0
        %549 = vmatpush1.bf16.msra.mxu0 %v507
        %550 = vmatprep.subr.bf16.mxu0 0
        %551 = vmatpush1.bf16.msra.mxu0 %v506
        %552 = vmatprep.subr.bf16.mxu0 0
        %553 = vmatpush1.bf16.msra.mxu0 %v505
        %554 = vmatprep.subr.bf16.mxu0 0
        %555 = vmatpush1.bf16.msra.mxu0 %v504
        %556 = vmatprep.subr.bf16.mxu0 0
        %557 = vmatpush1.bf16.msra.mxu0 %v503
        %558 = vmatprep.subr.bf16.mxu0 0
        %559 = vmatpush1.bf16.msra.mxu0 %v502
        %560 = vmatprep.subr.bf16.mxu0 0
        %561 = vmatpush1.bf16.msra.mxu0 %v501
        %562 = vmatprep.subr.bf16.mxu0 0
        %563 = vmatpush1.bf16.msra.mxu0 %v500
        %564 = vmatprep.subr.bf16.mxu0 0
        %565 = vmatpush2.bf16.msra.mxu0 %v515
        %566 = vmatprep.subr.bf16.mxu0 0
        %567 = vmatpush2.bf16.msra.mxu0 %v514
        %568 = vmatprep.subr.bf16.mxu0 0
        %569 = vmatpush2.bf16.msra.mxu0 %v513
        %570 = vmatprep.subr.bf16.mxu0 0
        %571 = vmatpush2.bf16.msra.mxu0 %v512
        %572 = vmatprep.subr.bf16.mxu0 0
        %573 = vmatpush2.bf16.msra.mxu0 %v511
        %574 = vmatprep.subr.bf16.mxu0 0
        %575 = vmatpush2.bf16.msra.mxu0 %v510
        %576 = vmatprep.subr.bf16.mxu0 0
        %577 = vmatpush2.bf16.msra.mxu0 %v509
        %578 = vmatprep.subr.bf16.mxu0 0
        %579 = vmatpush2.bf16.msra.mxu0 %v508
        %580 = vmatprep.mubr.bf16.mxu0 %v334
        %581 = vmatmul.mubr.bf16.gmra.mxu0 %v321
        %v582 = vpop.f32.mrf.mxu0
        %v583 = vadd.f32 %v402, %v582
        %v584 = vpop.f32.mrf.mxu0
        %v585 = vpop.f32.mrf.mxu0
        %v586 = vadd.f32 %v402, %v585
        %v587 = vpop.f32.mrf.mxu0
        %588 = vmatprep.mubr.bf16.mxu0 %v333
        %589 = vmatmul.mubr.bf16.gmra.mxu0 %v322
        %v590 = vpop.f32.mrf.mxu0
        %v591 = vadd.f32 %v402, %v590
        %v592 = vpop.f32.mrf.mxu0
        %v593 = vpop.f32.mrf.mxu0
        %v594 = vpop.f32.mrf.mxu0
        %595 = vdwg.mxu0
        %596 = vmatprep.subr.bf16.mxu0 0
        %597 = vmatpush1.bf16.msra.mxu0 %v523
        %598 = vmatprep.subr.bf16.mxu0 0
        %599 = vmatpush1.bf16.msra.mxu0 %v522
        %600 = vmatprep.subr.bf16.mxu0 0
        %601 = vmatpush1.bf16.msra.mxu0 %v521
        %602 = vmatprep.subr.bf16.mxu0 0
        %603 = vmatpush1.bf16.msra.mxu0 %v520
        %604 = vmatprep.subr.bf16.mxu0 0
        %605 = vmatpush1.bf16.msra.mxu0 %v519
        %606 = vmatprep.subr.bf16.mxu0 0
        %607 = vmatpush1.bf16.msra.mxu0 %v518
        %608 = vmatprep.subr.bf16.mxu0 0
        %609 = vmatpush1.bf16.msra.mxu0 %v517
        %610 = vmatprep.subr.bf16.mxu0 0
        %611 = vmatpush1.bf16.msra.mxu0 %v516
        %612 = vmatprep.subr.bf16.mxu0 0
        %613 = vmatpush2.bf16.msra.mxu0 0
        %614 = vmatprep.subr.bf16.mxu0 0
        %615 = vmatpush2.bf16.msra.mxu0 0
        %616 = vmatprep.subr.bf16.mxu0 0
        %617 = vmatpush2.bf16.msra.mxu0 0
        %618 = vmatprep.subr.bf16.mxu0 0
        %619 = vmatpush2.bf16.msra.mxu0 0
        %620 = vmatprep.subr.bf16.mxu0 0
        %621 = vmatpush2.bf16.msra.mxu0 0
        %622 = vmatprep.subr.bf16.mxu0 0
        %623 = vmatpush2.bf16.msra.mxu0 0
        %624 = vmatprep.subr.bf16.mxu0 0
        %625 = vmatpush2.bf16.msra.mxu0 0
        %626 = vmatprep.subr.bf16.mxu0 0
        %627 = vmatpush2.bf16.msra.mxu0 0
        %628 = vmatprep.mubr.bf16.mxu0 0
        %629 = vmatmul.mubr.bf16.gmra.mxu0 %v346
        %v630 = vpop.f32.mrf.mxu0
        %v631 = vadd.f32 %v583, %v630
        %v632 = vpop.f32.mrf.mxu0
        %v633 = vpop.f32.mrf.mxu0
        %v634 = vadd.f32 %v586, %v633
        %v635 = vpop.f32.mrf.mxu0
        %636 = vmatprep.mubr.bf16.mxu0 0
        %637 = vmatmul.mubr.bf16.gmra.mxu0 %v345
        %v638 = vpop.f32.mrf.mxu0
        %v639 = vadd.f32 %v591, %v638
        %v640 = vpop.f32.mrf.mxu0
        %v641 = vpop.f32.mrf.mxu0
        %v642 = vpop.f32.mrf.mxu0
        %643 = vdwg.mxu0
        %v644 = vmax.f32 %v631, 0.0
        %v645 = vmax.f32 %v634, 0.0
        %v646 = vmax.f32 %v639, 0.0
        %647 = vst [vmem:[#allocation2] sm:$0x3] 0
        %v648 = vpack.c.bf16 %v645, %v644
        %v649 = vpack.c.bf16 %v646, %v646
        %v652 = vunpack.c.l.b16 %v648
        %v653 = vunpack.c.h.b16 %v648
        %v654 = vunpack.c.l.b16 %v649
        %v655 = vpack.c.b16 %v652, %v652
        %v656 = vpack.c.b16 %v653, %v653
        %v657 = vpack.c.b16 %v654, %v654
        %vm658 = vcmask 1041408
        %vm659 = vcmask 1045508
        %vm660 = vmor %vm658, %vm659
        %v661 = vrot.slane %v655, 6
        %v662 = vrot.slane %v661, 4
        %v663 = vrot.slane %v656, 6
        %v664 = vsel %vm660, %v662, %v663
        %v665 = vrot.slane %v663, 4
        %v666 = vrot.slane %v657, 6
        %v667 = vsel %vm660, %v665, %v666
        %v668 = vrot.slane %v666, 4
        %673 = vst [vmem:[#allocation2] sm:$0xc] %v661
        %674 = vst [vmem:[#allocation2 + $0x4] sm:$0xf] %v664
        %675 = vst [vmem:[#allocation2 + $0x8] sm:$0xf] %v667
        %676 = vst [vmem:[#allocation2 + $0xc] sm:$0x3] %v668
        %v677 = vld [vmem:[#allocation2] sm:$0xf]
        %v678 = vld [vmem:[#allocation2 + $0x4] sm:$0xf]
        %v679 = vld [vmem:[#allocation2 + $0x8] sm:$0xf]
        %v680 = vld [vmem:[#allocation2] sm:$0xe]
        %v681 = vld [vmem:[#allocation2 + $0xc] sm:$0x1]
        %v682 = vld [vmem:[#allocation2] sm:$0xc]
        %v683 = vld [vmem:[#allocation2 + $0xc] sm:$0x3]
        %v687 = vunpack.c.l.b16 %v677
        %v688 = vunpack.c.l.b16 %v678
        %v689 = vunpack.c.l.b16 %v679
        %v690 = vpack.c.b16 %v688, %v687
        %v691 = vpack.c.b16 %v689, %v689
        %v696 = vunpack.c.l.b16 %v680
        %v697 = vunpack.c.l.b16 %v681
        %v698 = vpack.c.b16 %v688, %v696
        %v699 = vpack.c.b16 %v697, %v689
        %v700 = vrot.slane %v698, 1
        %v701 = vrot.slane %v699, 1
        %v702 = vsel %vm331, %v700, %v701
        %v707 = vunpack.c.l.b16 %v682
        %v708 = vunpack.c.l.b16 %v683
        %v709 = vpack.c.b16 %v688, %v707
        %v710 = vpack.c.b16 %v708, %v689
        %v711 = vrot.slane %v709, 2
        %v712 = vrot.slane %v710, 2
        %v713 = vsel %vm343, %v711, %v712
        %v716 = vld [vmem:[#allocation6] sm:$0xf]
        %v717 = vld [vmem:[#allocation6 + $0x4] sm:$0xf]
        %v718 = vld [vmem:[#allocation6 + $0x8] sm:$0xf]
        %v719 = vld [vmem:[#allocation6 + $0xc] sm:$0xf]
        %v720 = vld [vmem:[#allocation6 + $0x10] sm:$0xf]
        %v721 = vld [vmem:[#allocation6 + $0x14] sm:$0xf]
        %v722 = vld [vmem:[#allocation6 + $0x18] sm:$0xf]
        %v723 = vld [vmem:[#allocation6 + $0x1c] sm:$0xf]
        %v724 = vld [vmem:[#allocation6 + $0x20] sm:$0xf]
        %v725 = vld [vmem:[#allocation6 + $0x24] sm:$0xf]
        %v726 = vld [vmem:[#allocation6 + $0x28] sm:$0xf]
        %v727 = vld [vmem:[#allocation6 + $0x2c] sm:$0xf]
        %v728 = vld [vmem:[#allocation6 + $0x30] sm:$0xf]
        %v729 = vld [vmem:[#allocation6 + $0x34] sm:$0xf]
        %v730 = vld [vmem:[#allocation6 + $0x38] sm:$0xf]
        %v731 = vld [vmem:[#allocation6 + $0x3c] sm:$0xf]
        %v732 = vld [vmem:[#allocation6 + $0x40] sm:$0xf]
        %v733 = vld [vmem:[#allocation6 + $0x44] sm:$0xf]
        %v734 = vld [vmem:[#allocation6 + $0x48] sm:$0xf]
        %v735 = vld [vmem:[#allocation6 + $0x4c] sm:$0xf]
        %v736 = vld [vmem:[#allocation6 + $0x50] sm:$0xf]
        %v737 = vld [vmem:[#allocation6 + $0x54] sm:$0xf]
        %v738 = vld [vmem:[#allocation6 + $0x58] sm:$0xf]
        %v739 = vld [vmem:[#allocation6 + $0x5c] sm:$0xf]
        %v740 = vld [vmem:[#allocation6 + $0x60] sm:$0xf]
        %v741 = vld [vmem:[#allocation6 + $0x64] sm:$0xf]
        %v742 = vld [vmem:[#allocation6 + $0x68] sm:$0xf]
        %v743 = vld [vmem:[#allocation6 + $0x6c] sm:$0xf]
        %v744 = vld [vmem:[#allocation6 + $0x70] sm:$0xf]
        %v745 = vld [vmem:[#allocation6 + $0x74] sm:$0xf]
        %v746 = vld [vmem:[#allocation6 + $0x78] sm:$0xf]
        %v747 = vld [vmem:[#allocation6 + $0x7c] sm:$0xf]
        %v748 = vld [vmem:[#allocation6 + $0x80] sm:$0xf]
        %v749 = vld [vmem:[#allocation6 + $0x84] sm:$0xf]
        %v750 = vld [vmem:[#allocation6 + $0x88] sm:$0xf]
        %v751 = vld [vmem:[#allocation6 + $0x8c] sm:$0xf]
        %v752 = vld [vmem:[#allocation6 + $0x90] sm:$0xf]
        %v753 = vld [vmem:[#allocation6 + $0x94] sm:$0xf]
        %v754 = vld [vmem:[#allocation6 + $0x98] sm:$0xf]
        %v755 = vld [vmem:[#allocation6 + $0x9c] sm:$0xf]
        %v756 = vld [vmem:[#allocation6 + $0xa0] sm:$0xf]
        %v757 = vld [vmem:[#allocation6 + $0xa4] sm:$0xf]
        %v758 = vld [vmem:[#allocation6 + $0xa8] sm:$0xf]
        %v759 = vld [vmem:[#allocation6 + $0xac] sm:$0xf]
        %v760 = vld [vmem:[#allocation6 + $0xb0] sm:$0xf]
        %v761 = vld [vmem:[#allocation6 + $0xb4] sm:$0xf]
        %v762 = vld [vmem:[#allocation6 + $0xb8] sm:$0xf]
        %v763 = vld [vmem:[#allocation6 + $0xbc] sm:$0xf]
        %v764 = vld [vmem:[%s4] sm:$0x1]
        %v766 = vlaneseq
        %v767 = vshrl.u32 %v766, 7
        %v768 = vsub.s32 0, %v767
        %v769 = vrot.slane %v764, %v768
        %v819 = vunpack.c.l.b16 %v716
        %v820 = vunpack.c.l.b16 %v717
        %v821 = vunpack.c.l.b16 %v718
        %v822 = vunpack.c.l.b16 %v719
        %v823 = vunpack.c.l.b16 %v720
        %v824 = vunpack.c.l.b16 %v721
        %v825 = vunpack.c.l.b16 %v722
        %v826 = vunpack.c.l.b16 %v723
        %v827 = vunpack.c.l.b16 %v724
        %v828 = vunpack.c.l.b16 %v725
        %v829 = vunpack.c.l.b16 %v726
        %v830 = vunpack.c.l.b16 %v727
        %v831 = vunpack.c.l.b16 %v728
        %v832 = vunpack.c.l.b16 %v729
        %v833 = vunpack.c.l.b16 %v730
        %v834 = vunpack.c.l.b16 %v731
        %v835 = vunpack.c.l.b16 %v732
        %v836 = vunpack.c.l.b16 %v733
        %v837 = vunpack.c.l.b16 %v734
        %v838 = vunpack.c.l.b16 %v735
        %v839 = vunpack.c.l.b16 %v736
        %v840 = vunpack.c.l.b16 %v737
        %v841 = vunpack.c.l.b16 %v738
        %v842 = vunpack.c.l.b16 %v739
        %v843 = vunpack.c.l.b16 %v740
        %v844 = vunpack.c.l.b16 %v741
        %v845 = vunpack.c.l.b16 %v742
        %v846 = vunpack.c.l.b16 %v743
        %v847 = vunpack.c.l.b16 %v744
        %v848 = vunpack.c.l.b16 %v745
        %v849 = vunpack.c.l.b16 %v746
        %v850 = vunpack.c.l.b16 %v747
        %v851 = vunpack.c.l.b16 %v748
        %v852 = vunpack.c.l.b16 %v749
        %v853 = vunpack.c.l.b16 %v750
        %v854 = vunpack.c.l.b16 %v751
        %v855 = vunpack.c.l.b16 %v752
        %v856 = vunpack.c.l.b16 %v753
        %v857 = vunpack.c.l.b16 %v754
        %v858 = vunpack.c.l.b16 %v755
        %v859 = vunpack.c.l.b16 %v756
        %v860 = vunpack.c.l.b16 %v757
        %v861 = vunpack.c.l.b16 %v758
        %v862 = vunpack.c.l.b16 %v759
        %v863 = vunpack.c.l.b16 %v760
        %v864 = vunpack.c.l.b16 %v761
        %v865 = vunpack.c.l.b16 %v762
        %v866 = vunpack.c.l.b16 %v763
        %v867 = vpack.c.b16 %v820, %v819
        %v868 = vpack.c.b16 %v822, %v821
        %v869 = vpack.c.b16 %v824, %v823
        %v870 = vpack.c.b16 %v826, %v825
        %v871 = vpack.c.b16 %v828, %v827
        %v872 = vpack.c.b16 %v830, %v829
        %v873 = vpack.c.b16 %v832, %v831
        %v874 = vpack.c.b16 %v834, %v833
        %v875 = vpack.c.b16 %v836, %v835
        %v876 = vpack.c.b16 %v838, %v837
        %v877 = vpack.c.b16 %v840, %v839
        %v878 = vpack.c.b16 %v842, %v841
        %v879 = vpack.c.b16 %v844, %v843
        %v880 = vpack.c.b16 %v846, %v845
        %v881 = vpack.c.b16 %v848, %v847
        %v882 = vpack.c.b16 %v850, %v849
        %v883 = vpack.c.b16 %v852, %v851
        %v884 = vpack.c.b16 %v854, %v853
        %v885 = vpack.c.b16 %v856, %v855
        %v886 = vpack.c.b16 %v858, %v857
        %v887 = vpack.c.b16 %v860, %v859
        %v888 = vpack.c.b16 %v862, %v861
        %v889 = vpack.c.b16 %v864, %v863
        %v890 = vpack.c.b16 %v866, %v865
        %915 = vmatprep.subr.bf16.mxu0 0
        %916 = vmatpush1.bf16.msra.mxu0 %v874
        %917 = vmatprep.subr.bf16.mxu0 0
        %918 = vmatpush1.bf16.msra.mxu0 %v873
        %919 = vmatprep.subr.bf16.mxu0 0
        %920 = vmatpush1.bf16.msra.mxu0 %v872
        %921 = vmatprep.subr.bf16.mxu0 0
        %922 = vmatpush1.bf16.msra.mxu0 %v871
        %923 = vmatprep.subr.bf16.mxu0 0
        %924 = vmatpush1.bf16.msra.mxu0 %v870
        %925 = vmatprep.subr.bf16.mxu0 0
        %926 = vmatpush1.bf16.msra.mxu0 %v869
        %927 = vmatprep.subr.bf16.mxu0 0
        %928 = vmatpush1.bf16.msra.mxu0 %v868
        %929 = vmatprep.subr.bf16.mxu0 0
        %930 = vmatpush1.bf16.msra.mxu0 %v867
        %931 = vmatprep.subr.bf16.mxu0 0
        %932 = vmatpush2.bf16.msra.mxu0 %v882
        %933 = vmatprep.subr.bf16.mxu0 0
        %934 = vmatpush2.bf16.msra.mxu0 %v881
        %935 = vmatprep.subr.bf16.mxu0 0
        %936 = vmatpush2.bf16.msra.mxu0 %v880
        %937 = vmatprep.subr.bf16.mxu0 0
        %938 = vmatpush2.bf16.msra.mxu0 %v879
        %939 = vmatprep.subr.bf16.mxu0 0
        %940 = vmatpush2.bf16.msra.mxu0 %v878
        %941 = vmatprep.subr.bf16.mxu0 0
        %942 = vmatpush2.bf16.msra.mxu0 %v877
        %943 = vmatprep.subr.bf16.mxu0 0
        %944 = vmatpush2.bf16.msra.mxu0 %v876
        %945 = vmatprep.subr.bf16.mxu0 0
        %946 = vmatpush2.bf16.msra.mxu0 %v875
        %947 = vmatprep.mubr.bf16.mxu0 %v702
        %948 = vmatmul.mubr.bf16.gmra.mxu0 %v690
        %v949 = vpop.f32.mrf.mxu0
        %v950 = vadd.f32 %v769, %v949
        %v951 = vpop.f32.mrf.mxu0
        %v952 = vpop.f32.mrf.mxu0
        %v953 = vadd.f32 %v769, %v952
        %v954 = vpop.f32.mrf.mxu0
        %955 = vmatprep.mubr.bf16.mxu0 %v701
        %956 = vmatmul.mubr.bf16.gmra.mxu0 %v691
        %v957 = vpop.f32.mrf.mxu0
        %v958 = vadd.f32 %v769, %v957
        %v959 = vpop.f32.mrf.mxu0
        %v960 = vpop.f32.mrf.mxu0
        %v961 = vpop.f32.mrf.mxu0
        %962 = vdwg.mxu0
        %963 = vmatprep.subr.bf16.mxu0 0
        %964 = vmatpush1.bf16.msra.mxu0 %v890
        %965 = vmatprep.subr.bf16.mxu0 0
        %966 = vmatpush1.bf16.msra.mxu0 %v889
        %967 = vmatprep.subr.bf16.mxu0 0
        %968 = vmatpush1.bf16.msra.mxu0 %v888
        %969 = vmatprep.subr.bf16.mxu0 0
        %970 = vmatpush1.bf16.msra.mxu0 %v887
        %971 = vmatprep.subr.bf16.mxu0 0
        %972 = vmatpush1.bf16.msra.mxu0 %v886
        %973 = vmatprep.subr.bf16.mxu0 0
        %974 = vmatpush1.bf16.msra.mxu0 %v885
        %975 = vmatprep.subr.bf16.mxu0 0
        %976 = vmatpush1.bf16.msra.mxu0 %v884
        %977 = vmatprep.subr.bf16.mxu0 0
        %978 = vmatpush1.bf16.msra.mxu0 %v883
        %979 = vmatprep.subr.bf16.mxu0 0
        %980 = vmatpush2.bf16.msra.mxu0 0
        %981 = vmatprep.subr.bf16.mxu0 0
        %982 = vmatpush2.bf16.msra.mxu0 0
        %983 = vmatprep.subr.bf16.mxu0 0
        %984 = vmatpush2.bf16.msra.mxu0 0
        %985 = vmatprep.subr.bf16.mxu0 0
        %986 = vmatpush2.bf16.msra.mxu0 0
        %987 = vmatprep.subr.bf16.mxu0 0
        %988 = vmatpush2.bf16.msra.mxu0 0
        %989 = vmatprep.subr.bf16.mxu0 0
        %990 = vmatpush2.bf16.msra.mxu0 0
        %991 = vmatprep.subr.bf16.mxu0 0
        %992 = vmatpush2.bf16.msra.mxu0 0
        %993 = vmatprep.subr.bf16.mxu0 0
        %994 = vmatpush2.bf16.msra.mxu0 0
        %995 = vmatprep.mubr.bf16.mxu0 0
        %996 = vmatmul.mubr.bf16.gmra.mxu0 %v713
        %v997 = vpop.f32.mrf.mxu0
        %v998 = vadd.f32 %v950, %v997
        %v999 = vpop.f32.mrf.mxu0
        %v1000 = vpop.f32.mrf.mxu0
        %v1001 = vadd.f32 %v953, %v1000
        %v1002 = vpop.f32.mrf.mxu0
        %1003 = vmatprep.mubr.bf16.mxu0 0
        %1004 = vmatmul.mubr.bf16.gmra.mxu0 %v712
        %v1005 = vpop.f32.mrf.mxu0
        %v1006 = vadd.f32 %v958, %v1005
        %v1007 = vpop.f32.mrf.mxu0
        %v1008 = vpop.f32.mrf.mxu0
        %v1009 = vpop.f32.mrf.mxu0
        %1010 = vdwg.mxu0
        %v1011 = vmax.f32 %v998, 0.0
        %v1012 = vmax.f32 %v1001, 0.0
        %v1013 = vmax.f32 %v1006, 0.0
        %v1014 = vld [vmem:[%s306] sm:$0xc]
        %v1015 = vld [vmem:[%s306 + $0x4] sm:$0xf]
        %v1016 = vld [vmem:[%s306 + $0x8] sm:$0xf]
        %v1017 = vld [vmem:[%s306 + $0xc] sm:$0x3]
        %v1018 = vld [vmem:[%s5] sm:$0xf]
        %v1019 = vld [vmem:[%s5 + $0x4] sm:$0xf]
        %v1020 = vld [vmem:[%s5 + $0x8] sm:$0xf]
        %v1021 = vld [vmem:[%s5 + $0xc] sm:$0xf]
        %v1022 = vld [vmem:[%s5 + $0x10] sm:$0xf]
        %v1023 = vld [vmem:[%s5 + $0x14] sm:$0xf]
        %v1024 = vld [vmem:[%s5 + $0x18] sm:$0xf]
        %v1025 = vld [vmem:[%s5 + $0x1c] sm:$0xf]
        %v1026 = vld [vmem:[%s5 + $0x20] sm:$0xf]
        %v1027 = vld [vmem:[%s5 + $0x24] sm:$0xf]
        %v1028 = vld [vmem:[%s5 + $0x28] sm:$0xf]
        %v1029 = vld [vmem:[%s5 + $0x2c] sm:$0xf]
        %v1030 = vld [vmem:[%s5 + $0x30] sm:$0xf]
        %v1031 = vld [vmem:[%s5 + $0x34] sm:$0xf]
        %v1032 = vld [vmem:[%s5 + $0x38] sm:$0xf]
        %v1033 = vld [vmem:[%s5 + $0x3c] sm:$0xf]
        %v1034 = vld [vmem:[%s6] sm:$0x1]
        %v1036 = vlaneseq
        %v1037 = vshrl.u32 %v1036, 7
        %v1038 = vsub.s32 0, %v1037
        %v1039 = vrot.slane %v1034, %v1038
        %v1045 = vunpack.c.l.b16 %v1014
        %v1046 = vunpack.c.l.b16 %v1015
        %v1047 = vunpack.c.l.b16 %v1016
        %v1048 = vunpack.c.l.b16 %v1017
        %v1049 = vpack.c.b16 %v1046, %v1045
        %v1050 = vpack.c.b16 %v1048, %v1047
        %v1051 = vrot.slane %v1049, 2
        %v1052 = vrot.slane %v1050, 2
        %v1053 = vsel %vm343, %v1051, %v1052
        %v1072 = vunpack.c.l.b16 %v1018
        %v1073 = vunpack.c.l.b16 %v1019
        %v1074 = vunpack.c.l.b16 %v1020
        %v1075 = vunpack.c.l.b16 %v1021
        %v1076 = vunpack.c.l.b16 %v1022
        %v1077 = vunpack.c.l.b16 %v1023
        %v1078 = vunpack.c.l.b16 %v1024
        %v1079 = vunpack.c.l.b16 %v1025
        %v1080 = vunpack.c.l.b16 %v1026
        %v1081 = vunpack.c.l.b16 %v1027
        %v1082 = vunpack.c.l.b16 %v1028
        %v1083 = vunpack.c.l.b16 %v1029
        %v1084 = vunpack.c.l.b16 %v1030
        %v1085 = vunpack.c.l.b16 %v1031
        %v1086 = vunpack.c.l.b16 %v1032
        %v1087 = vunpack.c.l.b16 %v1033
        %v1088 = vpack.c.b16 %v1073, %v1072
        %v1089 = vpack.c.b16 %v1075, %v1074
        %v1090 = vpack.c.b16 %v1077, %v1076
        %v1091 = vpack.c.b16 %v1079, %v1078
        %v1092 = vpack.c.b16 %v1081, %v1080
        %v1093 = vpack.c.b16 %v1083, %v1082
        %v1094 = vpack.c.b16 %v1085, %v1084
        %v1095 = vpack.c.b16 %v1087, %v1086
        %1104 = vmatprep.subr.bf16.mxu0 0
        %1105 = vmatpush1.bf16.msra.mxu0 %v1095
        %1106 = vmatprep.subr.bf16.mxu0 0
        %1107 = vmatpush1.bf16.msra.mxu0 %v1094
        %1108 = vmatprep.subr.bf16.mxu0 0
        %1109 = vmatpush1.bf16.msra.mxu0 %v1093
        %1110 = vmatprep.subr.bf16.mxu0 0
        %1111 = vmatpush1.bf16.msra.mxu0 %v1092
        %1112 = vmatprep.subr.bf16.mxu0 0
        %1113 = vmatpush1.bf16.msra.mxu0 %v1091
        %1114 = vmatprep.subr.bf16.mxu0 0
        %1115 = vmatpush1.bf16.msra.mxu0 %v1090
        %1116 = vmatprep.subr.bf16.mxu0 0
        %1117 = vmatpush1.bf16.msra.mxu0 %v1089
        %1118 = vmatprep.subr.bf16.mxu0 0
        %1119 = vmatpush1.bf16.msra.mxu0 %v1088
        %1120 = vmatprep.subr.bf16.mxu0 0
        %1121 = vmatpush2.bf16.msra.mxu0 0
        %1122 = vmatprep.subr.bf16.mxu0 0
        %1123 = vmatpush2.bf16.msra.mxu0 0
        %1124 = vmatprep.subr.bf16.mxu0 0
        %1125 = vmatpush2.bf16.msra.mxu0 0
        %1126 = vmatprep.subr.bf16.mxu0 0
        %1127 = vmatpush2.bf16.msra.mxu0 0
        %1128 = vmatprep.subr.bf16.mxu0 0
        %1129 = vmatpush2.bf16.msra.mxu0 0
        %1130 = vmatprep.subr.bf16.mxu0 0
        %1131 = vmatpush2.bf16.msra.mxu0 0
        %1132 = vmatprep.subr.bf16.mxu0 0
        %1133 = vmatpush2.bf16.msra.mxu0 0
        %1134 = vmatprep.subr.bf16.mxu0 0
        %1135 = vmatpush2.bf16.msra.mxu0 0
        %1136 = vmatprep.mubr.bf16.mxu0 0
        %1137 = vmatmul.mubr.bf16.gmra.mxu0 %v1053
        %v1138 = vpop.f32.mrf.mxu0
        %v1139 = vadd.f32 %v1039, %v1138
        %v1140 = vpop.f32.mrf.mxu0
        %v1141 = vpop.f32.mrf.mxu0
        %v1142 = vadd.f32 %v1039, %v1141
        %v1143 = vpop.f32.mrf.mxu0
        %1144 = vmatprep.mubr.bf16.mxu0 0
        %1145 = vmatmul.mubr.bf16.gmra.mxu0 %v1052
        %v1146 = vpop.f32.mrf.mxu0
        %v1147 = vadd.f32 %v1039, %v1146
        %v1148 = vpop.f32.mrf.mxu0
        %v1149 = vpop.f32.mrf.mxu0
        %v1150 = vpop.f32.mrf.mxu0
        %1151 = vdwg.mxu0
        %v1152 = vadd.f32 %v1011, %v1139
        %v1153 = vadd.f32 %v1012, %v1142
        %v1154 = vadd.f32 %v1013, %v1147
        %v1155 = vmax.f32 %v1152, 0.0
        %v1156 = vmax.f32 %v1153, 0.0
        %v1157 = vmax.f32 %v1154, 0.0
        %1158 = vst [vmem:[%s301] sm:$0xff] %v1155
        %1159 = vst [vmem:[%s301 + $0x8] sm:$0xff] %v1156
        %1160 = vst [vmem:[%s301 + $0x10] sm:$0xff] %v1157
        %s1161 = sand.u32 %s183, 1
        %s1162 = scalar_lea.sflag [#allocation5], %s1161
        %s1163 = sand.u32 %s183, 1
        %s1164 = smul.addr %s1163, 24
        %s1165 = scalar_lea.vmem [#allocation8], %s1164
        // Predicated region
        $region57: #{tpu_custom_call.1} parent=47 // pred_check
          %p1166 = pneg %p193
        $region58: #{tpu_custom_call.1} parent=47 // pred_check_branch
          %1168 = sbr.rel (%p1166) target = $region60
        $region59: #{tpu_custom_call.1} parent=47 // pred_region
          %s1170 = ssub.s32 384, 384
          %1171 = vsyncadd %s1162, %s1170
          %s1172 = smul.addr %s23, 3
          %s1173 = smul.addr %s1172, 128
          %s1174 = scalar_lea.hbm %s7, %s1173
          %s1175 = sshll.u32 %s1165, 4
          %s1176 = int_to_ptr.vmem [resolvable:$true] %s1175
          %1181 = dma.vmem_to_hbm [thread:$0]  %s1176, 384, %s1174, %s1162, 128, 128, 8
        $region60: #{tpu_custom_call.1} parent=47 // pred_fallthru
          _
      $region48: #{tpu_custom_call.1} parent=5 // pred_fallthru
        _
      %p1182 = scmp.le.s32.totalorder 2, %s18
      // Predicated region
      $region61: #{tpu_custom_call.1} parent=5 // pred_check
        %p1183 = pneg %p1182
      $region62: #{tpu_custom_call.1} parent=5 // pred_check_branch
        %1185 = sbr.rel (%p1183) target = $region64
      $region63: #{tpu_custom_call.1} parent=5 // pred_region
        %s1186 = ssub.s32 %s18, 2
        // Predicated region
        $region65: #{tpu_custom_call.1} parent=63 // pred_check
          %p1187 = pneg %p199
        $region66: #{tpu_custom_call.1} parent=63 // pred_check_branch
          %1189 = sbr.rel (%p1187) target = $region68
        $region67: #{tpu_custom_call.1} parent=63 // pred_region
          %s1190 = sand.u32 %s184, 1
          %s1191 = scalar_lea.sflag [#allocation5], %s1190
          %s1192 = sand.u32 %s184, 1
          %s1193 = smul.addr %s1192, 24
          %s1194 = scalar_lea.vmem [#allocation8], %s1193
          %1195 = dma.done %s1191, 384
        $region68: #{tpu_custom_call.1} parent=63 // pred_fallthru
          _
      $region64: #{tpu_custom_call.1} parent=5 // pred_fallthru
        _
    $region6: #{tpu_custom_call.1} parent=1 // loop_footer
      %s22 = sadd.s32 1, %s18
    $region7: #{tpu_custom_call.1} parent=1 // loop_footer_branch
      %17 = sbr.rel target = $region3
    $region8: #{tpu_custom_call.1} parent=1 // loop_exit
      _
    %1196 = vsyncpa [#allocation4], 1
    %s1197 = scalar_lea.sflag [#allocation4], 1
    %1198 = vsyncpa %s1197, 1
    %1199 = vsyncpa [#allocation7], 1
    %1200 = vsyncpa [#allocation5], 1
    %s1201 = scalar_lea.sflag [#allocation5], 1
    %1202 = vsyncpa %s1201, 1

</llo_original>
